<compile_context>
chip_gen: v7x
topology: tpu7x:2x2x1
jax: 0.10.0
libtpu: 0.0.40
codegen_flags: <defaults>
</compile_context>

<pallas_src>
import itertools

import jax
import jax.numpy as jnp
import numpy as np
from jax.experimental import pallas as pl
from jax.experimental.pallas import tpu as pltpu


def get_combos(n, k):
    """Replicates CoLa.getcombos: sorted list of all n-choose-k index sets."""
    combos = sorted(sorted(c) for c in itertools.combinations(range(n), k))
    return np.asarray(combos, dtype=np.int32)


def build_selection_matrix(combos, in_dim, dtype=jnp.bfloat16):
    """S[c, j] = 1 if particle j is in combo c, else 0 (exact in bf16)."""
    ncombos = combos.shape[0]
    S = np.zeros((ncombos, in_dim), dtype=np.float32)
    for c, idxs in enumerate(combos):
        S[c, idxs] = 1.0
    return jnp.asarray(S, dtype=dtype)


def _cola_matmul_kernel(s_ref, x_ref, o_ref):
    # s_ref: (tm, in_dim)  bf16 0/1 selection tile
    # x_ref: (in_dim, tn)  four-vector components, batch flattened on lanes
    # o_ref: (tm, tn)      lane-dense output tile
    o_ref[...] = jnp.dot(
        s_ref[...].astype(x_ref.dtype),
        x_ref[...],
        preferred_element_type=jnp.float32,
    ).astype(o_ref.dtype)


def _pick_tile(dim, align, max_tile):
    """Full extent if it fits, else a large aligned tile (partial edge blocks OK)."""
    if dim <= max_tile:
        return dim
    assert max_tile % align == 0
    return max_tile


def _round_up(v, m):
    return ((v + m - 1) // m) * m


def cola_forward(x, S, *, tm_max=512, tn_max=512):
    """x: (B, in_dim, 4), S: (ncombos, in_dim) -> (B, ncombos, 4)."""
    B, in_dim, four = x.shape
    ncombos = S.shape[0]
    assert S.shape[1] == in_dim
    assert four == 4

    # Lane-dense restructuring: out2 = S @ X2 with X2 = (in_dim, B*4).
    N = B * four
    x2 = jnp.transpose(x, (1, 0, 2)).reshape(in_dim, N)

    tm = _pick_tile(ncombos, 8, tm_max)     # sublane axis of the output tile
    tn = _pick_tile(N, 128, tn_max)         # lane axis of the output tile
    grid = (pl.cdiv(ncombos, tm), pl.cdiv(N, tn))

    # Explicit VMEM budget (account for lane/sublane padding + double buffering);
    # keep it comfortably under v7x's 64 MiB physical VMEM.
    s_bytes = tm * _round_up(in_dim, 128) * S.dtype.itemsize
    x_bytes = _round_up(in_dim, 8) * _round_up(tn, 128) * x.dtype.itemsize
    o_bytes = _round_up(tm, 8) * _round_up(tn, 128) * x.dtype.itemsize
    vmem_limit = int(
        min(48 * 1024 * 1024,
            max(16 * 1024 * 1024, 3 * 2 * (s_bytes + x_bytes + o_bytes)))
    )

    cost = pl.CostEstimate(
        flops=2 * ncombos * in_dim * N,
        transcendentals=0,
        bytes_accessed=(S.size * S.dtype.itemsize
                        + x2.size * x2.dtype.itemsize
                        + ncombos * N * x.dtype.itemsize),
    )

    out2 = pl.pallas_call(
        _cola_matmul_kernel,
        out_shape=jax.ShapeDtypeStruct((ncombos, N), x.dtype),
        grid=grid,
        in_specs=[
            pl.BlockSpec((tm, in_dim), lambda i, j: (i, 0)),
            pl.BlockSpec((in_dim, tn), lambda i, j: (0, j)),
        ],
        out_specs=pl.BlockSpec((tm, tn), lambda i, j: (i, j)),
        compiler_params=pltpu.CompilerParams(
            # Both axes independent -> megacore sharding on v7x, harmless elsewhere.
            dimension_semantics=("parallel", "parallel"),
            vmem_limit_bytes=vmem_limit,
        ),
        cost_estimate=cost,
    )(S, x2)

    # Back to the PyTorch layout (B, ncombos, 4): cheap XLA reshape/transpose.
    return jnp.transpose(out2.reshape(ncombos, B, four), (1, 0, 2))


def _reference(x, combos):
    # Pure-JAX reference of the PyTorch forward:
    #   stack([sum(x[:, i, :], axis=1) for i in combos], dim=1)
    return jnp.stack([jnp.sum(x[:, list(idxs), :], axis=1) for idxs in combos],
                     axis=1)


if __name__ == "__main__":
    key = jax.random.PRNGKey(0)
    k_small, k_big = jax.random.split(key)

    # Small shapes consistent with the module: x must be (B, inDim, 4).
    B, in_dim, choose, fourvect = 2, 8, 2, 4
    combos = get_combos(in_dim, choose)            # (28, 2) for 8 choose 2
    S = build_selection_matrix(combos, in_dim)     # (28, 8) bf16 0/1

    x = jax.random.normal(k_small, (B, in_dim, fourvect), dtype=jnp.float32)
    out = jax.block_until_ready(cola_forward(x, S))
    ref = _reference(x, combos)
    assert out.shape == (B, combos.shape[0], fourvect)
    np.testing.assert_allclose(np.asarray(out), np.asarray(ref),
                               rtol=1e-5, atol=1e-5)

    # Slightly larger case to exercise the lane-dense tiled path (grid > 1 step).
    B2, in_dim2, choose2 = 160, 10, 3
    combos2 = get_combos(in_dim2, choose2)         # (120, 3) for 10 choose 3
    S2 = build_selection_matrix(combos2, in_dim2)  # (120, 10) bf16
    xb = jax.random.normal(k_big, (B2, in_dim2, fourvect), dtype=jnp.float32)
    out_b = jax.block_until_ready(cola_forward(xb, S2))
    ref_b = _reference(xb, combos2)
    assert out_b.shape == (B2, combos2.shape[0], fourvect)
    np.testing.assert_allclose(np.asarray(out_b), np.asarray(ref_b),
                               rtol=1e-5, atol=1e-5)

    print("KERNEL_OK")
</pallas_src>

<mosaic_0001>
module attributes {stable_mosaic.version = 11 : i64} {
  func.func @_cola_matmul_kernel(%arg0: i32, %arg1: i32, %arg2: memref<28x8xbf16, #tpu.memory_space<vmem>>, %arg3: memref<8x8xf32, #tpu.memory_space<vmem>>, %arg4: memref<28x8xf32, #tpu.memory_space<vmem>>) attributes {dimension_semantics = [#tpu.dimension_semantics<parallel>, #tpu.dimension_semantics<parallel>], iteration_bounds = array<i64: 1, 1>, scalar_prefetch = 0 : i64, scratch_operands = 0 : i64, tpu.core_type = #tpu.core_type<tc>, window_params = [{transform_indices = @transform_0, window_bounds = array<i64: 28, 8>}, {transform_indices = @transform_1, window_bounds = array<i64: 8, 8>}, {transform_indices = @transform_2, window_bounds = array<i64: 28, 8>}]} {
    %c0 = arith.constant 0 : index
    %c0_0 = arith.constant 0 : index
    %0 = vector.load %arg2[%c0, %c0_0] : memref<28x8xbf16, #tpu.memory_space<vmem>>, vector<28x8xbf16>
    %1 = arith.extf %0 : vector<28x8xbf16> to vector<28x8xf32>
    %c0_1 = arith.constant 0 : index
    %c0_2 = arith.constant 0 : index
    %2 = vector.load %arg3[%c0_1, %c0_2] : memref<8x8xf32, #tpu.memory_space<vmem>>, vector<8x8xf32>
    %cst = arith.constant dense<0.000000e+00> : vector<28x8xf32>
    %3 = tpu.matmul %1, %2, %cst {dimension_numbers = #tpu.dot_dimension_numbers<[1], [0], [0], [1], [0, 0, 1, 1], [], []>} : vector<28x8xf32>, vector<8x8xf32>, vector<28x8xf32> -> vector<28x8xf32>
    %c0_3 = arith.constant 0 : index
    %c0_4 = arith.constant 0 : index
    %4 = vector.load %arg4[%c0_3, %c0_4] : memref<28x8xf32, #tpu.memory_space<vmem>>, vector<28x8xf32>
    tpu.vector_store %arg4[%c0_3, %c0_4], %3 {strides = array<i32>} : memref<28x8xf32, #tpu.memory_space<vmem>>, vector<28x8xf32>,
    return
  }
  func.func @transform_0(%arg0: i32, %arg1: i32) -> (i32, i32) {
    %c0_i32 = arith.constant 0 : i32
    %c0_i32_0 = arith.constant 0 : i32
    return %arg0, %c0_i32 : i32, i32
  }
  func.func @transform_1(%arg0: i32, %arg1: i32) -> (i32, i32) {
    %c0_i32 = arith.constant 0 : i32
    %c0_i32_0 = arith.constant 0 : i32
    return %c0_i32, %arg1 : i32, i32
  }
  func.func @transform_2(%arg0: i32, %arg1: i32) -> (i32, i32) {
    %c0_i32 = arith.constant 0 : i32
    return %arg0, %arg1 : i32, i32
  }
}

</mosaic_0001>

<llo_original>
// kernel: tpu_custom_call.1
$region0: #{tpu_custom_call.1}
  #allocation0 [shape = 'u32[]', space=smem, size = 0x4, offset = 0x4, fixed_abs, tag = 'smem constant byte address 0x4 - core index']
  #allocation1 [shape = 'u32[144,128]{1,0:T(1,128)}', space=vmem, size = 0x12000, scoped, tag = 'internal scratch']
  %s0 = inlined_call_operand.vmem [shape: bf16[28,8], index: 0, kind: input, shape index: {}]
  %s1 = inlined_call_operand.vmem [shape: f32[8,8], index: 1, kind: input, shape index: {}]
  %s2 = inlined_call_operand.vmem [shape: f32[28,8], index: 2, kind: output, shape index: {}]
  %s3 = sld [smem:[#allocation0]]
  $region18: #{tpu_custom_call.1} parent=0
    _
  %s5 = ssub.s32 1, %s3
  %s6 = scalar_select 0, %s5, %s3
  // Predicated region
  $region2: #{tpu_custom_call.1} parent=0 // pred_check
    _
  $region3: #{tpu_custom_call.1} parent=0 // pred_check_branch
    %8 = sbr.rel (0) target = $region5
  $region4: #{tpu_custom_call.1} parent=0 // pred_region
    _
  $region5: #{tpu_custom_call.1} parent=0 // pred_fallthru
    _
  // Predicated region
  $region6: #{tpu_custom_call.1} parent=0 // pred_check
    _
  $region7: #{tpu_custom_call.1} parent=0 // pred_check_branch
    %10 = sbr.rel (0) target = $region9
  $region8: #{tpu_custom_call.1} parent=0 // pred_region
    _
  $region9: #{tpu_custom_call.1} parent=0 // pred_fallthru
    _
  %v11 = vld [vmem:[%s0] sm:$0xf]
  %v12 = vld [vmem:[%s0 + $0x4] sm:$0xf]
  %v13 = vld [vmem:[%s0 + $0x8] sm:$0xf]
  %v14 = vld [vmem:[%s0 + $0xc] sm:$0x3]
  %v15 = vunpack.c.l.bf16 %v11
  %v16 = vunpack.c.l.bf16 %v12
  %v17 = vunpack.c.l.bf16 %v13
  %v18 = vunpack.c.l.bf16 %v14
  %v19 = vld [vmem:[%s1] sm:$0xff]
  %vm20 = vcmask 64512
  %v22 = vsel %vm20, %v15, 0
  %v25 = vsel %vm20, %v16, 0
  %v28 = vsel %vm20, %v17, 0
  %v31 = vsel %vm20, %v18, 0
  %33 = vmatprep.subr.mxu0 0.0
  %34 = vmatpush1.msra.mxu0 %v19
  %35 = vmatprep.subr.mxu0 0.0
  %36 = vmatpush1.msra.mxu0 0.0
  %37 = vmatprep.subr.mxu0 0.0
  %38 = vmatpush1.msra.mxu0 0.0
  %39 = vmatprep.subr.mxu0 0.0
  %40 = vmatpush1.msra.mxu0 0.0
  %41 = vmatprep.subr.mxu0 0.0
  %42 = vmatpush1.msra.mxu0 0.0
  %43 = vmatprep.subr.mxu0 0.0
  %44 = vmatpush1.msra.mxu0 0.0
  %45 = vmatprep.subr.mxu0 0.0
  %46 = vmatpush1.msra.mxu0 0.0
  %47 = vmatprep.subr.mxu0 0.0
  %48 = vmatpush1.msra.mxu0 0.0
  %49 = vmatprep.subr.mxu0 0.0
  %50 = vmatpush1.msra.mxu0 0.0
  %51 = vmatprep.subr.mxu0 0.0
  %52 = vmatpush1.msra.mxu0 0.0
  %53 = vmatprep.subr.mxu0 0.0
  %54 = vmatpush1.msra.mxu0 0.0
  %55 = vmatprep.subr.mxu0 0.0
  %56 = vmatpush1.msra.mxu0 0.0
  %57 = vmatprep.subr.mxu0 0.0
  %58 = vmatpush1.msra.mxu0 0.0
  %59 = vmatprep.subr.mxu0 0.0
  %60 = vmatpush1.msra.mxu0 0.0
  %61 = vmatprep.subr.mxu0 0.0
  %62 = vmatpush1.msra.mxu0 0.0
  %63 = vmatprep.subr.mxu0 0.0
  %64 = vmatpush1.msra.mxu0 0.0
  %65 = vmatprep.subr.mxu0 0.0
  %66 = vmatpush1.msra.mxu0 0.0
  %67 = vmatprep.subr.mxu0 0.0
  %68 = vmatpush1.msra.mxu0 0.0
  %69 = vmatprep.subr.mxu0 0.0
  %70 = vmatpush1.msra.mxu0 0.0
  %71 = vmatprep.subr.mxu0 0.0
  %72 = vmatpush1.msra.mxu0 0.0
  %73 = vmatprep.subr.mxu0 0.0
  %74 = vmatpush1.msra.mxu0 0.0
  %75 = vmatprep.subr.mxu0 0.0
  %76 = vmatpush1.msra.mxu0 0.0
  %77 = vmatprep.subr.mxu0 0.0
  %78 = vmatpush1.msra.mxu0 0.0
  %79 = vmatprep.subr.mxu0 0.0
  %80 = vmatpush1.msra.mxu0 0.0
  %81 = vmatprep.subr.mxu0 0.0
  %82 = vmatpush1.msra.mxu0 0.0
  %83 = vmatprep.subr.mxu0 0.0
  %84 = vmatpush1.msra.mxu0 0.0
  %85 = vmatprep.subr.mxu0 0.0
  %86 = vmatpush1.msra.mxu0 0.0
  %87 = vmatprep.subr.mxu0 0.0
  %88 = vmatpush1.msra.mxu0 0.0
  %89 = vmatprep.subr.mxu0 0.0
  %90 = vmatpush1.msra.mxu0 0.0
  %91 = vmatprep.subr.mxu0 0.0
  %92 = vmatpush1.msra.mxu0 0.0
  %93 = vmatprep.subr.mxu0 0.0
  %94 = vmatpush1.msra.mxu0 0.0
  %95 = vmatprep.subr.mxu0 0.0
  %96 = vmatpush1.msra.mxu0 0.0
  %97 = vmatprep.mubr.f32.mxu0 0.0
  %98 = vmatmul.mubr.f32.gmra.mrb[0].mxu0 %v22
  %v99 = vpop.f32.mrb[0].mxu0
  %v100 = vadd.f32 0.0, %v99
  %v101 = vpop.f32.mrb[0].mxu0
  %102 = vmatprep.mubr.f32.mxu0 0.0
  %103 = vmatmul.mubr.f32.gmra.mrb[0].mxu0 %v25
  %v104 = vpop.f32.mrb[0].mxu0
  %v105 = vadd.f32 0.0, %v104
  %v106 = vpop.f32.mrb[0].mxu0
  %107 = vmatprep.mubr.f32.mxu0 0.0
  %108 = vmatmul.mubr.f32.gmra.mrb[0].mxu0 %v28
  %v109 = vpop.f32.mrb[0].mxu0
  %v110 = vadd.f32 0.0, %v109
  %v111 = vpop.f32.mrb[0].mxu0
  %112 = vmatprep.mubr.f32.mxu0 0.0
  %113 = vmatmul.mubr.f32.gmra.mrb[0].mxu0 %v31
  %v114 = vpop.f32.mrb[0].mxu0
  %v115 = vadd.f32 0.0, %v114
  %v116 = vpop.f32.mrb[0].mxu0
  %117 = vdwg.mxu0
  %118 = vst.msk [vmem:[%s2] sm:$0xff] %vm20, %v100
  %119 = vst.msk [vmem:[%s2 + $0x8] sm:$0xff] %vm20, %v105
  %120 = vst.msk [vmem:[%s2 + $0x10] sm:$0xff] %vm20, %v110
  %vm121 = vcmask 60416
  %122 = vst.msk [vmem:[%s2 + $0x18] sm:$0xf] %vm121, %v115
  // Predicated region
  $region10: #{tpu_custom_call.1} parent=0 // pred_check
    _
  $region11: #{tpu_custom_call.1} parent=0 // pred_check_branch
    %124 = sbr.rel (0) target = $region13
  $region12: #{tpu_custom_call.1} parent=0 // pred_region
    _
  $region13: #{tpu_custom_call.1} parent=0 // pred_fallthru
    _
  // Predicated region
  $region14: #{tpu_custom_call.1} parent=0 // pred_check
    _
  $region15: #{tpu_custom_call.1} parent=0 // pred_check_branch
    %126 = sbr.rel (0) target = $region17
  $region16: #{tpu_custom_call.1} parent=0 // pred_region
    _
  $region17: #{tpu_custom_call.1} parent=0 // pred_fallthru
    _

</llo_original>
